<compile_context>
chip_gen: v7x
topology: tpu7x:2x2x1
jax: 0.10.0
libtpu: 0.0.40
codegen_flags: <defaults>
</compile_context>

<pallas_src>
import functools

import jax
import jax.numpy as jnp
from jax.experimental import pallas as pl
from jax.experimental.pallas import tpu as pltpu

_HIDDEN = 128          # fixed by the module
_LANE = 128            # lane-dense padded classifier width
_BN_EPS = 1e-5
_NEG_INF = -1e30       # padded logit bias; exp(-1e30) == 0 exactly in f32


# ---------------------------------------------------------------------------
# Kernels
# ---------------------------------------------------------------------------
def _fused_head_kernel(x_ref, w1_ref, gamma_ref, beta_ref, w2_ref, b2_ref, o_ref):
    """Whole-batch single-block path, one head per grid step.

    Linear(no bias) -> BatchNorm1d(train, two-pass var) -> ReLU -> Linear -> Softmax.
    Classifier is lane-padded to 128 columns (bias -1e30 -> padded probs are exactly 0),
    so the second MXU pass, softmax reductions and the output store are lane dense.
    """
    # bf16 operands, f32 accumulate.
    h = jnp.dot(x_ref[...], w1_ref[...], preferred_element_type=jnp.float32)

    # Batch statistics (biased variance, two-pass: no cancellation).
    inv_b = 1.0 / h.shape[0]
    mean = jnp.sum(h, axis=0, keepdims=True) * inv_b
    d = h - mean
    var = jnp.sum(d * d, axis=0, keepdims=True) * inv_b

    # Fold BN into one scale/shift (b1 cancels exactly under batch-stat BN).
    scale = gamma_ref[...] * jax.lax.rsqrt(var + _BN_EPS)
    shift = beta_ref[...] - mean * scale
    hr = jnp.maximum(h * scale + shift, 0.0)

    logits = jnp.dot(hr.astype(w2_ref.dtype), w2_ref[...],
                     preferred_element_type=jnp.float32) + b2_ref[...]

    # Numerically stable softmax; exact divide (approx reciprocal was the
    # source of the previous correctness failure and buys nothing here).
    m = jnp.max(logits, axis=1, keepdims=True)
    e = jnp.exp(logits - m)
    o_ref[...] = (e / jnp.sum(e, axis=1, keepdims=True)).astype(o_ref.dtype)


def _bn_stats_kernel(x_ref, w1_ref, stats_ref):
    """Pass 1 of the batch-tiled path: per-head, per-column sum / sum-of-squares
    of h = x @ w1 accumulated across batch tiles (stats block resident per head)."""
    @pl.when(pl.program_id(1) == 0)
    def _():
        stats_ref[...] = jnp.zeros_like(stats_ref)

    h = jnp.dot(x_ref[...], w1_ref[...], preferred_element_type=jnp.float32)
    # Single-pass sum/sumsq across tiles; fine for BN-scale activations.
    # TODO(synk): switch to shifted/Welford accumulation if inputs are not pre-normalized.
    stats_ref[0:1, :] = stats_ref[0:1, :] + jnp.sum(h, axis=0, keepdims=True)
    stats_ref[1:2, :] = stats_ref[1:2, :] + jnp.sum(h * h, axis=0, keepdims=True)


def _apply_head_kernel(x_ref, w1_ref, scale_ref, shift_ref, w2_ref, b2_ref, o_ref):
    """Pass 2 of the batch-tiled path: recompute h per tile (cheap), apply the
    precomputed BN scale/shift, ReLU, classifier matmul and softmax."""
    h = jnp.dot(x_ref[...], w1_ref[...], preferred_element_type=jnp.float32)
    hr = jnp.maximum(h * scale_ref[...] + shift_ref[...], 0.0)
    logits = jnp.dot(hr.astype(w2_ref.dtype), w2_ref[...],
                     preferred_element_type=jnp.float32) + b2_ref[...]
    m = jnp.max(logits, axis=1, keepdims=True)
    e = jnp.exp(logits - m)
    o_ref[...] = (e / jnp.sum(e, axis=1, keepdims=True)).astype(o_ref.dtype)


# ---------------------------------------------------------------------------
# BlockSpec helpers / VMEM budgeting
# ---------------------------------------------------------------------------
def _head_const_spec(*trail):
    """Block covering the full trailing dims, selected by grid axis 0 (head) only."""
    n = len(trail)
    return pl.BlockSpec((pl.Squeezed(),) + tuple(trail),
                        lambda h, *rest, _n=n: (h,) + (0,) * _n)


@functools.lru_cache(maxsize=None)
def _vmem_budget_bytes():
    # Generation-aware: v5e/v6e = 128 MiB physical VMEM, v7x = 64 MiB per TC.
    # Leave ~30% headroom for double buffering / compiler scratch.
    try:
        cap = pltpu.get_tpu_info().vmem_capacity_bytes
    except Exception:
        cap = 64 * 1024 * 1024          # conservative fallback (v7x per-TC)
    return int(cap * 0.7)


def _fused_vmem_estimate(batch, in_dim_p, act_dtype, w_dtype):
    act = jnp.dtype(act_dtype).itemsize
    wit = jnp.dtype(w_dtype).itemsize
    x_b = batch * in_dim_p * act
    w_b = (in_dim_p * _HIDDEN + _HIDDEN * _LANE) * wit
    small_b = 4 * _LANE * 4
    out_b = batch * _LANE * 4
    interm_b = 3 * batch * _HIDDEN * 4            # h / hr / e f32 temporaries
    return 2 * (x_b + w_b + small_b + out_b) + interm_b   # x2 for double buffering


def _default_batch_tile(batch):
    # ~512 rows keeps the per-step working set a few MiB (near HBM roofline)
    # while fitting v7x's 64 MiB per-TC VMEM.  TODO(synk): sweep per generation.
    return min(512, ((batch + 7) // 8) * 8)


# ---------------------------------------------------------------------------
# Forward paths
# ---------------------------------------------------------------------------
def _forward_fused(x2, w1, gamma, beta, w2, b2, vmem_limit):
    _, batch, in_dim_p = x2.shape
    return pl.pallas_call(
        _fused_head_kernel,
        out_shape=jax.ShapeDtypeStruct((2, batch, _LANE), jnp.float32),
        grid=(2,),
        in_specs=[
            _head_const_spec(batch, in_dim_p),     # x
            _head_const_spec(in_dim_p, _HIDDEN),   # w1
            _head_const_spec(1, _HIDDEN),          # gamma
            _head_const_spec(1, _HIDDEN),          # beta
            _head_const_spec(_HIDDEN, _LANE),      # w2 (lane-padded)
            _head_const_spec(1, _LANE),            # b2 (lane-padded, -1e30)
        ],
        out_specs=_head_const_spec(batch, _LANE),
        compiler_params=pltpu.CompilerParams(
            # TODO(synk): verify "parallel" shards the head axis across v7x's two
            # TensorCores; otherwise switch to CORE_PARALLEL / pl.core_map.
            dimension_semantics=("parallel",),
            vmem_limit_bytes=vmem_limit),
    )(x2, w1, gamma, beta, w2, b2)


def _forward_tiled(x2, w1, gamma, beta, w2, b2, batch_tile, vmem_limit):
    _, batch, in_dim_p = x2.shape
    bt = max(8, (int(batch_tile) // 8) * 8)
    batch_p = ((batch + bt - 1) // bt) * bt
    if batch_p != batch:
        # Zero rows contribute nothing to sum / sum-of-squares; sliced off below.
        x2 = jnp.pad(x2, ((0, 0), (0, batch_p - batch), (0, 0)))
    n_bt = batch_p // bt

    # Pass 1: per-head BN statistics across batch tiles (accumulator pattern).
    stats = pl.pallas_call(
        _bn_stats_kernel,
        out_shape=jax.ShapeDtypeStruct((2, 2, _HIDDEN), jnp.float32),
        grid=(2, n_bt),
        in_specs=[
            pl.BlockSpec((pl.Squeezed(), bt, in_dim_p), lambda h, b: (h, b, 0)),
            _head_const_spec(in_dim_p, _HIDDEN),   # w1 DMA'd once per head
        ],
        out_specs=pl.BlockSpec((pl.Squeezed(), 2, _HIDDEN), lambda h, b: (h, 0, 0)),
        compiler_params=pltpu.CompilerParams(
            dimension_semantics=("parallel", "arbitrary"),
            vmem_limit_bytes=vmem_limit),
    )(x2, w1)

    # Tiny (2,128) math between the passes: fold BN into scale/shift.
    inv_b = 1.0 / batch                                 # true batch size
    mean = stats[:, 0:1, :] * inv_b
    var = jnp.maximum(stats[:, 1:2, :] * inv_b - mean * mean, 0.0)
    scale = gamma * jax.lax.rsqrt(var + _BN_EPS)
    shift = beta - mean * scale

    # Pass 2: normalize + ReLU + classifier + softmax per batch tile.
    out = pl.pallas_call(
        _apply_head_kernel,
        out_shape=jax.ShapeDtypeStruct((2, batch_p, _LANE), jnp.float32),
        grid=(2, n_bt),
        in_specs=[
            pl.BlockSpec((pl.Squeezed(), bt, in_dim_p), lambda h, b: (h, b, 0)),
            _head_const_spec(in_dim_p, _HIDDEN),
            _head_const_spec(1, _HIDDEN),          # scale
            _head_const_spec(1, _HIDDEN),          # shift
            _head_const_spec(_HIDDEN, _LANE),
            _head_const_spec(1, _LANE),
        ],
        out_specs=pl.BlockSpec((pl.Squeezed(), bt, _LANE), lambda h, b: (h, b, 0)),
        compiler_params=pltpu.CompilerParams(
            dimension_semantics=("parallel", "parallel"),
            vmem_limit_bytes=vmem_limit),
    )(x2, w1, scale, shift, w2, b2)
    return out[:, :batch, :]


def cluster_head_forward_stacked(x2, packed, *, batch_tile=None):
    """Hot path. x2: pre-stacked (2, B, in_dim) activations (x2[0]=text, x2[1]=image).

    Returns the lane-padded (2, B, 128) probability slab (padded columns are
    exactly 0); slice [:, :, :num_clusters] in the consumer.
    """
    w1, gamma, beta = packed["w1"], packed["gamma"], packed["beta"]
    w2, b2 = packed["w2"], packed["b2"]
    assert x2.ndim == 3 and x2.shape[0] == 2
    in_dim_p = w1.shape[1]
    assert x2.shape[2] <= in_dim_p

    x2 = x2.astype(w1.dtype)                              # bf16 (no-op if already)
    if x2.shape[2] != in_dim_p:
        x2 = jnp.pad(x2, ((0, 0), (0, 0), (0, in_dim_p - x2.shape[2])))

    vmem_limit = _vmem_budget_bytes()
    if batch_tile is None:
        if _fused_vmem_estimate(x2.shape[1], in_dim_p, x2.dtype, w1.dtype) <= vmem_limit:
            return _forward_fused(x2, w1, gamma, beta, w2, b2, vmem_limit)
        batch_tile = _default_batch_tile(x2.shape[1])
    return _forward_tiled(x2, w1, gamma, beta, w2, b2, batch_tile, vmem_limit)


def cluster_head_forward(text, image, packed, num_clusters):
    """API-compatible with ClusterHead.forward(text, image).

    NOTE: incurs one extra activation stack copy and an output slice; prefer
    cluster_head_forward_stacked with a pre-stacked input for the hot path.
    """
    x2 = jnp.stack([text, image], axis=0)
    out = cluster_head_forward_stacked(x2, packed)
    return out[0, :, :num_clusters], out[1, :, :num_clusters]


# ---------------------------------------------------------------------------
# Parameters (matches the PyTorch module: trunc_normal_(std=0.02) weights,
# default nn.Linear bias init, default BatchNorm1d affine init).
# ---------------------------------------------------------------------------
def _trunc_normal(key, shape, std=0.02):
    return std * jax.random.truncated_normal(key, -2.0, 2.0, shape, jnp.float32)


def _linear_bias(key, fan_in, out_dim):
    bound = 1.0 / jnp.sqrt(float(fan_in))
    return jax.random.uniform(key, (1, out_dim), jnp.float32, -bound, bound)


def init_head_params(key, in_dim, hidden, num_clusters):
    assert hidden == _HIDDEN
    k1, k2, k3, k4 = jax.random.split(key, 4)
    return {
        # stored as (in, out) = transpose of PyTorch (out, in)
        "w1": _trunc_normal(k1, (in_dim, hidden)),
        "b1": _linear_bias(k2, in_dim, hidden),
        "gamma": jnp.ones((1, hidden), jnp.float32),
        "beta": jnp.zeros((1, hidden), jnp.float32),
        "w2": _trunc_normal(k3, (hidden, num_clusters)),
        "b2": _linear_bias(k4, hidden, num_clusters),
    }


def prepare_params(params_text, params_image, *, matmul_dtype=jnp.bfloat16):
    """Stack both heads, lane-pad the classifier to 128 columns, feature-pad w1
    to a multiple of 128 and cast matmul weights to bf16. Call ONCE at init."""
    def stack(name):
        return jnp.stack([params_text[name], params_image[name]], axis=0)

    # b1 intentionally dropped: under batch-statistic BatchNorm it cancels exactly.
    w1 = stack("w1")                                   # (2, in_dim, 128)
    gamma = stack("gamma").astype(jnp.float32)         # (2, 1, 128)
    beta = stack("beta").astype(jnp.float32)
    w2 = stack("w2")                                   # (2, 128, C)
    b2 = stack("b2").astype(jnp.float32)               # (2, 1, C)

    in_dim = w1.shape[1]
    num_clusters = w2.shape[2]
    assert num_clusters <= _LANE

    in_dim_p = ((in_dim + _LANE - 1) // _LANE) * _LANE
    if in_dim_p != in_dim:
        w1 = jnp.pad(w1, ((0, 0), (0, in_dim_p - in_dim), (0, 0)))
    pad_c = _LANE - num_clusters
    w2 = jnp.pad(w2, ((0, 0), (0, 0), (0, pad_c)))
    b2 = jnp.pad(b2, ((0, 0), (0, 0), (0, pad_c)), constant_values=_NEG_INF)

    # TODO(synk): emit bf16 probabilities if the downstream consumer tolerates it.
    return {"w1": w1.astype(matmul_dtype), "gamma": gamma, "beta": beta,
            "w2": w2.astype(matmul_dtype), "b2": b2}


def _reference(x, p):
    # Pure-JAX f32 reference of the PyTorch module (training-mode BN, with b1).
    h = x @ p["w1"] + p["b1"]
    mean = h.mean(axis=0, keepdims=True)
    var = ((h - mean) ** 2).mean(axis=0, keepdims=True)
    h = (h - mean) / jnp.sqrt(var + _BN_EPS) * p["gamma"] + p["beta"]
    h = jnp.maximum(h, 0.0)
    logits = h @ p["w2"] + p["b2"]
    return jax.nn.softmax(logits, axis=1)


if __name__ == "__main__":
    B, IN_DIM, NUM_CLUSTERS = 16, 256, 10   # small shapes, lane-aligned in_dim

    key = jax.random.PRNGKey(0)
    k_x, k_tp, k_ip = jax.random.split(key, 3)

    # Pre-stacked (2, B, in_dim) activations: x2[0] = text, x2[1] = image.
    x2 = jax.random.normal(k_x, (2, B, IN_DIM), jnp.float32)

    params_text = init_head_params(k_tp, IN_DIM, _HIDDEN, NUM_CLUSTERS)
    params_image = init_head_params(k_ip, IN_DIM, _HIDDEN, NUM_CLUSTERS)
    packed = prepare_params(params_text, params_image)   # once, outside the hot path

    fwd = functools.partial(jax.jit, static_argnames=("batch_tile",))(
        cluster_head_forward_stacked)

    # 1) whole-batch fused path (small B)
    out_fused = fwd(x2, packed)
    jax.block_until_ready(out_fused)

    # 2) batch-tiled two-pass-BN path (forced small tile to exercise it)
    out_tiled = fwd(x2, packed, batch_tile=8)
    jax.block_until_ready(out_tiled)

    ref_text = _reference(x2[0], params_text)
    ref_image = _reference(x2[1], params_image)

    for out in (out_fused, out_tiled):
        lt = out[0, :, :NUM_CLUSTERS]
        li = out[1, :, :NUM_CLUSTERS]
        assert lt.shape == (B, NUM_CLUSTERS) and li.shape == (B, NUM_CLUSTERS)
        # bf16 matmul operands (f32 accumulate) -> ~1e-3 agreement with f32 reference
        assert jnp.allclose(lt, ref_text, atol=5e-3)
        assert jnp.allclose(li, ref_image, atol=5e-3)
        # exact-divide softmax: rows sum to 1; padded columns are exactly 0
        assert jnp.allclose(jnp.sum(lt, axis=1), 1.0, atol=1e-5)
        assert jnp.allclose(jnp.sum(li, axis=1), 1.0, atol=1e-5)
        assert jnp.all(out[:, :, NUM_CLUSTERS:] == 0.0)

    # Convenience (PyTorch-signature) wrapper also works.
    lt2, li2 = cluster_head_forward(x2[0], x2[1], packed, NUM_CLUSTERS)
    jax.block_until_ready((lt2, li2))
    assert jnp.allclose(lt2, ref_text, atol=5e-3)
    assert jnp.allclose(li2, ref_image, atol=5e-3)

    print("KERNEL_OK")
</pallas_src>

<mosaic_0001>
module attributes {stable_mosaic.version = 11 : i64} {
  func.func @_fused_head_kernel(%arg0: i32, %arg1: memref<1x16x256xbf16, #tpu.memory_space<vmem>>, %arg2: memref<1x256x128xbf16, #tpu.memory_space<vmem>>, %arg3: memref<1x1x128xf32, #tpu.memory_space<vmem>>, %arg4: memref<1x1x128xf32, #tpu.memory_space<vmem>>, %arg5: memref<1x128x128xbf16, #tpu.memory_space<vmem>>, %arg6: memref<1x1x128xf32, #tpu.memory_space<vmem>>, %arg7: memref<1x16x128xf32, #tpu.memory_space<vmem>>) attributes {dimension_semantics = [#tpu.dimension_semantics<parallel>], iteration_bounds = array<i64: 2>, scalar_prefetch = 0 : i64, scratch_operands = 0 : i64, tpu.core_type = #tpu.core_type<tc>, window_params = [{transform_indices = @transform_0, window_bounds = array<i64: 1, 16, 256>}, {transform_indices = @transform_1, window_bounds = array<i64: 1, 256, 128>}, {transform_indices = @transform_2, window_bounds = array<i64: 1, 1, 128>}, {transform_indices = @transform_3, window_bounds = array<i64: 1, 1, 128>}, {transform_indices = @transform_4, window_bounds = array<i64: 1, 128, 128>}, {transform_indices = @transform_5, window_bounds = array<i64: 1, 1, 128>}, {transform_indices = @transform_6, window_bounds = array<i64: 1, 16, 128>}]} {
    %c0 = arith.constant 0 : index
    %c0_0 = arith.constant 0 : index
    %c0_1 = arith.constant 0 : index
    %0 = vector.load %arg1[%c0, %c0_0, %c0_1] : memref<1x16x256xbf16, #tpu.memory_space<vmem>>, vector<1x16x256xbf16>
    %1 = vector.shape_cast %0 : vector<1x16x256xbf16> to vector<16x256xbf16>
    %c0_2 = arith.constant 0 : index
    %c0_3 = arith.constant 0 : index
    %c0_4 = arith.constant 0 : index
    %2 = vector.load %arg2[%c0_2, %c0_3, %c0_4] : memref<1x256x128xbf16, #tpu.memory_space<vmem>>, vector<1x256x128xbf16>
    %3 = vector.shape_cast %2 : vector<1x256x128xbf16> to vector<256x128xbf16>
    %cst = arith.constant dense<0.000000e+00> : vector<16x128xf32>
    %4 = tpu.matmul %1, %3, %cst {dimension_numbers = #tpu.dot_dimension_numbers<[1], [0], [0], [1], [0, 0, 1, 1], [], []>} : vector<16x256xbf16>, vector<256x128xbf16>, vector<16x128xf32> -> vector<16x128xf32>
    %cst_5 = arith.constant dense<0.000000e+00> : vector<128xf32>
    %5 = vector.multi_reduction <add>, %4, %cst_5 [0] : vector<16x128xf32> to vector<128xf32>
    %6 = vector.shape_cast %5 : vector<128xf32> to vector<1x128xf32>
    %cst_6 = arith.constant 6.250000e-02 : f32
    %7 = vector.broadcast %cst_6 : f32 to vector<1x128xf32>
    %8 = arith.mulf %6, %7 : vector<1x128xf32>
    %9 = vector.broadcast %8 : vector<1x128xf32> to vector<16x128xf32>
    %10 = arith.subf %4, %9 : vector<16x128xf32>
    %11 = arith.mulf %10, %10 : vector<16x128xf32>
    %cst_7 = arith.constant dense<0.000000e+00> : vector<128xf32>
    %12 = vector.multi_reduction <add>, %11, %cst_7 [0] : vector<16x128xf32> to vector<128xf32>
    %13 = vector.shape_cast %12 : vector<128xf32> to vector<1x128xf32>
    %cst_8 = arith.constant 6.250000e-02 : f32
    %14 = vector.broadcast %cst_8 : f32 to vector<1x128xf32>
    %15 = arith.mulf %13, %14 : vector<1x128xf32>
    %c0_9 = arith.constant 0 : index
    %c0_10 = arith.constant 0 : index
    %c0_11 = arith.constant 0 : index
    %16 = vector.load %arg3[%c0_9, %c0_10, %c0_11] : memref<1x1x128xf32, #tpu.memory_space<vmem>>, vector<1x1x128xf32>
    %17 = vector.shape_cast %16 : vector<1x1x128xf32> to vector<1x128xf32>
    %cst_12 = arith.constant 9.99999974E-6 : f32
    %18 = vector.broadcast %cst_12 : f32 to vector<1x128xf32>
    %19 = arith.addf %15, %18 : vector<1x128xf32>
    %20 = math.rsqrt %19 : vector<1x128xf32>
    %21 = arith.mulf %17, %20 : vector<1x128xf32>
    %c0_13 = arith.constant 0 : index
    %c0_14 = arith.constant 0 : index
    %c0_15 = arith.constant 0 : index
    %22 = vector.load %arg4[%c0_13, %c0_14, %c0_15] : memref<1x1x128xf32, #tpu.memory_space<vmem>>, vector<1x1x128xf32>
    %23 = vector.shape_cast %22 : vector<1x1x128xf32> to vector<1x128xf32>
    %24 = arith.mulf %8, %21 : vector<1x128xf32>
    %25 = arith.subf %23, %24 : vector<1x128xf32>
    %26 = vector.broadcast %21 : vector<1x128xf32> to vector<16x128xf32>
    %27 = arith.mulf %4, %26 : vector<16x128xf32>
    %28 = vector.broadcast %25 : vector<1x128xf32> to vector<16x128xf32>
    %29 = arith.addf %27, %28 : vector<16x128xf32>
    %cst_16 = arith.constant 0.000000e+00 : f32
    %30 = vector.broadcast %cst_16 : f32 to vector<16x128xf32>
    %31 = arith.maximumf %29, %30 : vector<16x128xf32>
    %32 = arith.truncf %31 : vector<16x128xf32> to vector<16x128xbf16>
    %c0_17 = arith.constant 0 : index
    %c0_18 = arith.constant 0 : index
    %c0_19 = arith.constant 0 : index
    %33 = vector.load %arg5[%c0_17, %c0_18, %c0_19] : memref<1x128x128xbf16, #tpu.memory_space<vmem>>, vector<1x128x128xbf16>
    %34 = vector.shape_cast %33 : vector<1x128x128xbf16> to vector<128x128xbf16>
    %cst_20 = arith.constant dense<0.000000e+00> : vector<16x128xf32>
    %35 = tpu.matmul %32, %34, %cst_20 {dimension_numbers = #tpu.dot_dimension_numbers<[1], [0], [0], [1], [0, 0, 1, 1], [], []>} : vector<16x128xbf16>, vector<128x128xbf16>, vector<16x128xf32> -> vector<16x128xf32>
    %c0_21 = arith.constant 0 : index
    %c0_22 = arith.constant 0 : index
    %c0_23 = arith.constant 0 : index
    %36 = vector.load %arg6[%c0_21, %c0_22, %c0_23] : memref<1x1x128xf32, #tpu.memory_space<vmem>>, vector<1x1x128xf32>
    %37 = vector.shape_cast %36 : vector<1x1x128xf32> to vector<1x128xf32>
    %38 = vector.broadcast %37 : vector<1x128xf32> to vector<16x128xf32>
    %39 = arith.addf %35, %38 : vector<16x128xf32>
    %cst_24 = arith.constant dense<0xFF800000> : vector<16xf32>
    %40 = vector.multi_reduction <maximumf>, %39, %cst_24 [1] : vector<16x128xf32> to vector<16xf32>
    %41 = vector.shape_cast %40 : vector<16xf32> to vector<16x1xf32>
    %42 = vector.broadcast %41 : vector<16x1xf32> to vector<16x128xf32>
    %43 = arith.subf %39, %42 : vector<16x128xf32>
    %44 = math.exp %43 : vector<16x128xf32>
    %cst_25 = arith.constant dense<0.000000e+00> : vector<16xf32>
    %45 = vector.multi_reduction <add>, %44, %cst_25 [1] : vector<16x128xf32> to vector<16xf32>
    %46 = vector.shape_cast %45 : vector<16xf32> to vector<16x1xf32>
    %47 = vector.broadcast %46 : vector<16x1xf32> to vector<16x128xf32>
    %48 = arith.divf %44, %47 : vector<16x128xf32>
    %c0_26 = arith.constant 0 : index
    %c0_27 = arith.constant 0 : index
    %c0_28 = arith.constant 0 : index
    %49 = vector.load %arg7[%c0_26, %c0_27, %c0_28] : memref<1x16x128xf32, #tpu.memory_space<vmem>>, vector<1x16x128xf32>
    %50 = vector.shape_cast %49 : vector<1x16x128xf32> to vector<16x128xf32>
    %51 = vector.shape_cast %48 : vector<16x128xf32> to vector<1x16x128xf32>
    tpu.vector_store %arg7[%c0_26, %c0_27, %c0_28], %51 {strides = array<i32>} : memref<1x16x128xf32, #tpu.memory_space<vmem>>, vector<1x16x128xf32>,
    return
  }
  func.func @transform_0(%arg0: i32) -> (i32, i32, i32) {
    %c0_i32 = arith.constant 0 : i32
    %c0_i32_0 = arith.constant 0 : i32
    %c0_i32_1 = arith.constant 0 : i32
    return %arg0, %c0_i32, %c0_i32_0 : i32, i32, i32
  }
  func.func @transform_1(%arg0: i32) -> (i32, i32, i32) {
    %c0_i32 = arith.constant 0 : i32
    %c0_i32_0 = arith.constant 0 : i32
    %c0_i32_1 = arith.constant 0 : i32
    return %arg0, %c0_i32, %c0_i32_0 : i32, i32, i32
  }
  func.func @transform_2(%arg0: i32) -> (i32, i32, i32) {
    %c0_i32 = arith.constant 0 : i32
    %c0_i32_0 = arith.constant 0 : i32
    %c0_i32_1 = arith.constant 0 : i32
    return %arg0, %c0_i32, %c0_i32_0 : i32, i32, i32
  }
  func.func @transform_3(%arg0: i32) -> (i32, i32, i32) {
    %c0_i32 = arith.constant 0 : i32
    %c0_i32_0 = arith.constant 0 : i32
    %c0_i32_1 = arith.constant 0 : i32
    return %arg0, %c0_i32, %c0_i32_0 : i32, i32, i32
  }
  func.func @transform_4(%arg0: i32) -> (i32, i32, i32) {
    %c0_i32 = arith.constant 0 : i32
    %c0_i32_0 = arith.constant 0 : i32
    %c0_i32_1 = arith.constant 0 : i32
    return %arg0, %c0_i32, %c0_i32_0 : i32, i32, i32
  }
  func.func @transform_5(%arg0: i32) -> (i32, i32, i32) {
    %c0_i32 = arith.constant 0 : i32
    %c0_i32_0 = arith.constant 0 : i32
    %c0_i32_1 = arith.constant 0 : i32
    return %arg0, %c0_i32, %c0_i32_0 : i32, i32, i32
  }
  func.func @transform_6(%arg0: i32) -> (i32, i32, i32) {
    %c0_i32 = arith.constant 0 : i32
    %c0_i32_0 = arith.constant 0 : i32
    %c0_i32_1 = arith.constant 0 : i32
    return %arg0, %c0_i32, %c0_i32_0 : i32, i32, i32
  }
}

</mosaic_0001>

<llo_original>
// kernel: cluster_head_forward_stacked.1
$region0: #{cluster_head_forward_stacked.1}
  #allocation0 [shape = 'u32[]', space=smem, size = 0x4, offset = 0x4, fixed_abs, tag = 'smem constant byte address 0x4 - core index']
  #allocation1 [shape = 'u32[144,128]{1,0:T(1,128)}', space=vmem, size = 0x12000, scoped, tag = 'internal scratch']
  %s0 = inlined_call_operand.vmem [shape: bf16[2,16,256], index: 0, kind: input, shape index: {}]
  %s1 = inlined_call_operand.hbm [shape: bf16[2,256,128], index: 1, kind: input, shape index: {}]
  %s2 = inlined_call_operand.vmem [shape: f32[2,1,128], index: 2, kind: input, shape index: {}]
  %s3 = inlined_call_operand.vmem [shape: f32[2,1,128], index: 3, kind: input, shape index: {}]
  %s4 = inlined_call_operand.hbm [shape: bf16[2,128,128], index: 4, kind: input, shape index: {}]
  %s5 = inlined_call_operand.vmem [shape: f32[2,1,128], index: 5, kind: input, shape index: {}]
  %s6 = inlined_call_operand.hbm [shape: f32[2,16,128], index: 6, kind: output, shape index: {}]
  %s7 = sld [smem:[#allocation0]]
  $region65: #{cluster_head_forward_stacked.1} parent=0
    _
  %s9 = ssub.s32 1, %s7
  %s10 = scalar_select 0, %s9, %s7
  $region1: #{cluster_head_forward_stacked.1} parent=0
    #allocation2 [shape = 'u8[131072]{0}', space=vmem, size = 0x20000, scoped, tag = 'input window, operand 1']
    #allocation3 [shape = 's32[2]{0}', space=sflag, size = 0x8, scoped, tag = 'scoped memory for cluster_head_forward_stacked.1']
    #allocation4 [shape = 's32[2]{0}', space=sflag, size = 0x8, scoped, tag = 'scoped memory for cluster_head_forward_stacked.1']
    #allocation5 [shape = 'u8[65536]{0}', space=vmem, size = 0x10000, scoped, tag = 'input window, operand 4']
    #allocation6 [shape = 's32[2]{0}', space=sflag, size = 0x8, scoped, tag = 'scoped memory for cluster_head_forward_stacked.1']
    #allocation7 [shape = 'u8[16384]{0}', space=vmem, size = 0x4000, scoped, tag = 'output window, operand 0']
    %11 = vsyncpa [#allocation3], 0
    %s12 = scalar_lea.sflag [#allocation3], 1
    %13 = vsyncpa %s12, 0
    %14 = vsyncpa [#allocation6], 0
    %s15 = scalar_lea.sflag [#allocation6], 1
    %16 = vsyncpa %s15, 0
    %17 = vsyncpa [#allocation4], 0
    %s18 = scalar_lea.sflag [#allocation4], 1
    %19 = vsyncpa %s18, 0
    loop: start=0, step=1, limit=4
    $region2: #{cluster_head_forward_stacked.1} parent=1 // loop_pre_header
      _
    $region3: #{cluster_head_forward_stacked.1} parent=1 // loop_header
      %s21 = sphi 0, %s25
      %p22 = scmp.ge.s32.totalorder %s21, 4
      %s31 = sphi 0, %s33
      %s34 = sphi 0, %s31
      %s35 = sphi 0, %s34
      %s51 = sphi 0, %s35
      %s57 = sphi 0, %s59
      %s60 = sphi 0, %s57
      %s61 = sphi 0, %s60
      %s77 = sphi 0, %s61
      %s83 = sphi 0, %s85
      %s86 = sphi 0, %s83
      %s87 = sphi 0, %s86
      %s103 = sphi 0, %s87
      %s109 = sphi 0, %s111
      %s112 = sphi 0, %s109
      %s113 = sphi 0, %s112
      %s129 = sphi 0, %s113
      %s135 = sphi 0, %s137
      %s138 = sphi 0, %s135
      %s139 = sphi 0, %s138
      %s155 = sphi 0, %s139
      %s161 = sphi 0, %s163
      %s164 = sphi 0, %s161
      %s165 = sphi 0, %s164
      %s181 = sphi 0, %s165
      %s187 = sphi 0, %s189
      %s190 = sphi 0, %s187
      %s191 = sphi 0, %s190
      %s207 = sphi 0, %s191
    $region4: #{cluster_head_forward_stacked.1} parent=1 // loop_header_branch
      %24 = sbr.rel (%p22) target = $region8
    $region5: #{cluster_head_forward_stacked.1} parent=1 // loop_body
      %s26 = ssub.s32 %s21, 1
      %s27 = ssub.s32 %s21, 2
      %s28 = sadd.s32 %s21, 1
      %s29 = ssub.s32 %s21, %s28
      %p30 = scmp.eq.s32.totalorder %s29, 0
      %s32 = sadd.s32 %s31, 1
      %s33 = scalar_select %p30, %s31, %s32
      %p36 = pneg %p30
      %p37 = scmp.eq.s32.totalorder %s21, 1
      %p38 = por %p36, %p37
      %p39 = scmp.ne.s32.totalorder %s31, %s34
      %p40 = scmp.eq.s32.totalorder %s21, 0
      %p41 = por %p39, %p40
      %p42 = scmp.ne.s32.totalorder %s31, %s34
      %p43 = scmp.eq.s32.totalorder %s26, 1
      %p44 = por %p42, %p43
      %p45 = scmp.ne.s32.totalorder %s34, %s35
      %p46 = scmp.eq.s32.totalorder %s26, 0
      %p47 = por %p45, %p46
      %p48 = scmp.ne.s32.totalorder %s34, %s35
      %p49 = scmp.eq.s32.totalorder %s27, 1
      %p50 = por %p48, %p49
      %p52 = scmp.ne.s32.totalorder %s35, %s51
      %p53 = scmp.eq.s32.totalorder %s27, 0
      %p54 = por %p52, %p53
      %s55 = ssub.s32 %s21, %s28
      %p56 = scmp.eq.s32.totalorder %s55, 0
      %s58 = sadd.s32 %s57, 1
      %s59 = scalar_select %p56, %s57, %s58
      %p62 = pneg %p56
      %p63 = scmp.eq.s32.totalorder %s21, 1
      %p64 = por %p62, %p63
      %p65 = scmp.ne.s32.totalorder %s57, %s60
      %p66 = scmp.eq.s32.totalorder %s21, 0
      %p67 = por %p65, %p66
      %p68 = scmp.ne.s32.totalorder %s57, %s60
      %p69 = scmp.eq.s32.totalorder %s26, 1
      %p70 = por %p68, %p69
      %p71 = scmp.ne.s32.totalorder %s60, %s61
      %p72 = scmp.eq.s32.totalorder %s26, 0
      %p73 = por %p71, %p72
      %p74 = scmp.ne.s32.totalorder %s60, %s61
      %p75 = scmp.eq.s32.totalorder %s27, 1
      %p76 = por %p74, %p75
      %p78 = scmp.ne.s32.totalorder %s61, %s77
      %p79 = scmp.eq.s32.totalorder %s27, 0
      %p80 = por %p78, %p79
      %s81 = ssub.s32 %s21, %s28
      %p82 = scmp.eq.s32.totalorder %s81, 0
      %s84 = sadd.s32 %s83, 1
      %s85 = scalar_select %p82, %s83, %s84
      %p88 = pneg %p82
      %p89 = scmp.eq.s32.totalorder %s21, 1
      %p90 = por %p88, %p89
      %p91 = scmp.ne.s32.totalorder %s83, %s86
      %p92 = scmp.eq.s32.totalorder %s21, 0
      %p93 = por %p91, %p92
      %p94 = scmp.ne.s32.totalorder %s83, %s86
      %p95 = scmp.eq.s32.totalorder %s26, 1
      %p96 = por %p94, %p95
      %p97 = scmp.ne.s32.totalorder %s86, %s87
      %p98 = scmp.eq.s32.totalorder %s26, 0
      %p99 = por %p97, %p98
      %p100 = scmp.ne.s32.totalorder %s86, %s87
      %p101 = scmp.eq.s32.totalorder %s27, 1
      %p102 = por %p100, %p101
      %p104 = scmp.ne.s32.totalorder %s87, %s103
      %p105 = scmp.eq.s32.totalorder %s27, 0
      %p106 = por %p104, %p105
      %s107 = ssub.s32 %s21, %s28
      %p108 = scmp.eq.s32.totalorder %s107, 0
      %s110 = sadd.s32 %s109, 1
      %s111 = scalar_select %p108, %s109, %s110
      %p114 = pneg %p108
      %p115 = scmp.eq.s32.totalorder %s21, 1
      %p116 = por %p114, %p115
      %p117 = scmp.ne.s32.totalorder %s109, %s112
      %p118 = scmp.eq.s32.totalorder %s21, 0
      %p119 = por %p117, %p118
      %p120 = scmp.ne.s32.totalorder %s109, %s112
      %p121 = scmp.eq.s32.totalorder %s26, 1
      %p122 = por %p120, %p121
      %p123 = scmp.ne.s32.totalorder %s112, %s113
      %p124 = scmp.eq.s32.totalorder %s26, 0
      %p125 = por %p123, %p124
      %p126 = scmp.ne.s32.totalorder %s112, %s113
      %p127 = scmp.eq.s32.totalorder %s27, 1
      %p128 = por %p126, %p127
      %p130 = scmp.ne.s32.totalorder %s113, %s129
      %p131 = scmp.eq.s32.totalorder %s27, 0
      %p132 = por %p130, %p131
      %s133 = ssub.s32 %s21, %s28
      %p134 = scmp.eq.s32.totalorder %s133, 0
      %s136 = sadd.s32 %s135, 1
      %s137 = scalar_select %p134, %s135, %s136
      %p140 = pneg %p134
      %p141 = scmp.eq.s32.totalorder %s21, 1
      %p142 = por %p140, %p141
      %p143 = scmp.ne.s32.totalorder %s135, %s138
      %p144 = scmp.eq.s32.totalorder %s21, 0
      %p145 = por %p143, %p144
      %p146 = scmp.ne.s32.totalorder %s135, %s138
      %p147 = scmp.eq.s32.totalorder %s26, 1
      %p148 = por %p146, %p147
      %p149 = scmp.ne.s32.totalorder %s138, %s139
      %p150 = scmp.eq.s32.totalorder %s26, 0
      %p151 = por %p149, %p150
      %p152 = scmp.ne.s32.totalorder %s138, %s139
      %p153 = scmp.eq.s32.totalorder %s27, 1
      %p154 = por %p152, %p153
      %p156 = scmp.ne.s32.totalorder %s139, %s155
      %p157 = scmp.eq.s32.totalorder %s27, 0
      %p158 = por %p156, %p157
      %s159 = ssub.s32 %s21, %s28
      %p160 = scmp.eq.s32.totalorder %s159, 0
      %s162 = sadd.s32 %s161, 1
      %s163 = scalar_select %p160, %s161, %s162
      %p166 = pneg %p160
      %p167 = scmp.eq.s32.totalorder %s21, 1
      %p168 = por %p166, %p167
      %p169 = scmp.ne.s32.totalorder %s161, %s164
      %p170 = scmp.eq.s32.totalorder %s21, 0
      %p171 = por %p169, %p170
      %p172 = scmp.ne.s32.totalorder %s161, %s164
      %p173 = scmp.eq.s32.totalorder %s26, 1
      %p174 = por %p172, %p173
      %p175 = scmp.ne.s32.totalorder %s164, %s165
      %p176 = scmp.eq.s32.totalorder %s26, 0
      %p177 = por %p175, %p176
      %p178 = scmp.ne.s32.totalorder %s164, %s165
      %p179 = scmp.eq.s32.totalorder %s27, 1
      %p180 = por %p178, %p179
      %p182 = scmp.ne.s32.totalorder %s165, %s181
      %p183 = scmp.eq.s32.totalorder %s27, 0
      %p184 = por %p182, %p183
      %s185 = ssub.s32 %s21, %s28
      %p186 = scmp.eq.s32.totalorder %s185, 0
      %s188 = sadd.s32 %s187, 1
      %s189 = scalar_select %p186, %s187, %s188
      %p192 = pneg %p186
      %p193 = scmp.eq.s32.totalorder %s21, 1
      %p194 = por %p192, %p193
      %p195 = scmp.ne.s32.totalorder %s187, %s190
      %p196 = scmp.eq.s32.totalorder %s21, 0
      %p197 = por %p195, %p196
      %p198 = scmp.ne.s32.totalorder %s187, %s190
      %p199 = scmp.eq.s32.totalorder %s26, 1
      %p200 = por %p198, %p199
      %p201 = scmp.ne.s32.totalorder %s190, %s191
      %p202 = scmp.eq.s32.totalorder %s26, 0
      %p203 = por %p201, %p202
      %p204 = scmp.ne.s32.totalorder %s190, %s191
      %p205 = scmp.eq.s32.totalorder %s27, 1
      %p206 = por %p204, %p205
      %p208 = scmp.ne.s32.totalorder %s191, %s207
      %p209 = scmp.eq.s32.totalorder %s27, 0
      %p210 = por %p208, %p209
      %p211 = scmp.le.s32.totalorder 1, %s21
      %p212 = scmp.lt.s32.totalorder %s21, 3
      %p213 = pnand %p211, %p212
      %p214 = pneg %p213
      // Predicated region
      $region9: #{cluster_head_forward_stacked.1} parent=5 // pred_check
        _
      $region10: #{cluster_head_forward_stacked.1} parent=5 // pred_check_branch
        %216 = sbr.rel (%p213) target = $region12
      $region11: #{cluster_head_forward_stacked.1} parent=5 // pred_region
        %s217 = ssub.s32 %s21, 1
      $region12: #{cluster_head_forward_stacked.1} parent=5 // pred_fallthru
        _
      %p218 = scmp.lt.s32.totalorder %s21, 2
      // Predicated region
      $region13: #{cluster_head_forward_stacked.1} parent=5 // pred_check
        %p219 = pneg %p218
      $region14: #{cluster_head_forward_stacked.1} parent=5 // pred_check_branch
        %221 = sbr.rel (%p219) target = $region16
      $region15: #{cluster_head_forward_stacked.1} parent=5 // pred_region
        // Predicated region
        $region17: #{cluster_head_forward_stacked.1} parent=15 // pred_check
          %p222 = pneg %p41
        $region18: #{cluster_head_forward_stacked.1} parent=15 // pred_check_branch
          %224 = sbr.rel (%p222) target = $region20
        $region19: #{cluster_head_forward_stacked.1} parent=15 // pred_region
          %p225 = scmp.lt.s32.totalorder %s21, 1
          %s226 = scalar_select %p225, %s21, 1
          %s227 = smul.addr %s226, 4
          %s228 = smul.addr %s227, 4
          %s229 = scalar_lea.vmem %s0, %s228
        $region20: #{cluster_head_forward_stacked.1} parent=15 // pred_fallthru
          _
        // Predicated region
        $region21: #{cluster_head_forward_stacked.1} parent=15 // pred_check
          %p230 = pneg %p67
        $region22: #{cluster_head_forward_stacked.1} parent=15 // pred_check_branch
          %232 = sbr.rel (%p230) target = $region24
        $region23: #{cluster_head_forward_stacked.1} parent=15 // pred_region
          %s233 = sand.u32 %s57, 1
          %s234 = scalar_lea.sflag [#allocation3], %s233
          %s235 = sand.u32 %s57, 1
          %s236 = smul.addr %s235, 128
          %s237 = scalar_lea.vmem [#allocation2], %s236
          %s239 = ssub.s32 2048, 2048
          %240 = vsyncadd %s234, %s239
          %s241 = smul.addr %s21, 32
          %s242 = smul.addr %s241, 64
          %s243 = scalar_lea.hbm %s1, %s242
          %s244 = sshll.u32 %s237, 4
          %s245 = int_to_ptr.vmem [resolvable:$true] %s244
          %250 = dma.hbm_to_vmem [thread:$0]  %s243, 2048, %s245, %s234, 64, 64, 4
        $region24: #{cluster_head_forward_stacked.1} parent=15 // pred_fallthru
          _
        // Predicated region
        $region25: #{cluster_head_forward_stacked.1} parent=15 // pred_check
          %p251 = pneg %p93
        $region26: #{cluster_head_forward_stacked.1} parent=15 // pred_check_branch
          %253 = sbr.rel (%p251) target = $region28
        $region27: #{cluster_head_forward_stacked.1} parent=15 // pred_region
          %p254 = scmp.lt.s32.totalorder %s21, 1
          %s255 = scalar_select %p254, %s21, 1
          %s256 = scalar_lea.vmem %s2, %s255
        $region28: #{cluster_head_forward_stacked.1} parent=15 // pred_fallthru
          _
        // Predicated region
        $region29: #{cluster_head_forward_stacked.1} parent=15 // pred_check
          %p257 = pneg %p119
        $region30: #{cluster_head_forward_stacked.1} parent=15 // pred_check_branch
          %259 = sbr.rel (%p257) target = $region32
        $region31: #{cluster_head_forward_stacked.1} parent=15 // pred_region
          %p260 = scmp.lt.s32.totalorder %s21, 1
          %s261 = scalar_select %p260, %s21, 1
          %s262 = scalar_lea.vmem %s3, %s261
        $region32: #{cluster_head_forward_stacked.1} parent=15 // pred_fallthru
          _
        // Predicated region
        $region33: #{cluster_head_forward_stacked.1} parent=15 // pred_check
          %p263 = pneg %p145
        $region34: #{cluster_head_forward_stacked.1} parent=15 // pred_check_branch
          %265 = sbr.rel (%p263) target = $region36
        $region35: #{cluster_head_forward_stacked.1} parent=15 // pred_region
          %s266 = sand.u32 %s135, 1
          %s267 = scalar_lea.sflag [#allocation6], %s266
          %s268 = sand.u32 %s135, 1
          %s269 = smul.addr %s268, 64
          %s270 = scalar_lea.vmem [#allocation5], %s269
          %s272 = ssub.s32 1024, 1024
          %273 = vsyncadd %s267, %s272
          %s274 = smul.addr %s21, 16
          %s275 = smul.addr %s274, 64
          %s276 = scalar_lea.hbm %s4, %s275
          %s277 = sshll.u32 %s270, 4
          %s278 = int_to_ptr.vmem [resolvable:$true] %s277
          %283 = dma.hbm_to_vmem [thread:$0]  %s276, 1024, %s278, %s267, 64, 64, 4
        $region36: #{cluster_head_forward_stacked.1} parent=15 // pred_fallthru
          _
        // Predicated region
        $region37: #{cluster_head_forward_stacked.1} parent=15 // pred_check
          %p284 = pneg %p171
        $region38: #{cluster_head_forward_stacked.1} parent=15 // pred_check_branch
          %286 = sbr.rel (%p284) target = $region40
        $region39: #{cluster_head_forward_stacked.1} parent=15 // pred_region
          %p287 = scmp.lt.s32.totalorder %s21, 1
          %s288 = scalar_select %p287, %s21, 1
          %s289 = scalar_lea.vmem %s5, %s288
        $region40: #{cluster_head_forward_stacked.1} parent=15 // pred_fallthru
          _
      $region16: #{cluster_head_forward_stacked.1} parent=5 // pred_fallthru
        _
      %p290 = scmp.le.s32.totalorder 1, %s21
      %p291 = scmp.lt.s32.totalorder %s21, 3
      %p292 = pnand %p290, %p291
      %p293 = pneg %p292
      // Predicated region
      $region41: #{cluster_head_forward_stacked.1} parent=5 // pred_check
        _
      $region42: #{cluster_head_forward_stacked.1} parent=5 // pred_check_branch
        %295 = sbr.rel (%p292) target = $region44
      $region43: #{cluster_head_forward_stacked.1} parent=5 // pred_region
        %s296 = ssub.s32 %s21, 1
        %s297 = sand.u32 %s60, 1
        %s298 = scalar_lea.sflag [#allocation3], %s297
        %s299 = sand.u32 %s60, 1
        %s300 = smul.addr %s299, 128
        %s301 = scalar_lea.vmem [#allocation2], %s300
        // Predicated region
        $region45: #{cluster_head_forward_stacked.1} parent=43 // pred_check
          %p302 = pneg %p73
        $region46: #{cluster_head_forward_stacked.1} parent=43 // pred_check_branch
          %304 = sbr.rel (%p302) target = $region48
        $region47: #{cluster_head_forward_stacked.1} parent=43 // pred_region
          %305 = dma.done %s298, 2048
        $region48: #{cluster_head_forward_stacked.1} parent=43 // pred_fallthru
          _
        %s306 = sand.u32 %s138, 1
        %s307 = scalar_lea.sflag [#allocation6], %s306
        %s308 = sand.u32 %s138, 1
        %s309 = smul.addr %s308, 64
        %s310 = scalar_lea.vmem [#allocation5], %s309
        // Predicated region
        $region49: #{cluster_head_forward_stacked.1} parent=43 // pred_check
          %p311 = pneg %p151
        $region50: #{cluster_head_forward_stacked.1} parent=43 // pred_check_branch
          %313 = sbr.rel (%p311) target = $region52
        $region51: #{cluster_head_forward_stacked.1} parent=43 // pred_region
          %314 = dma.done %s307, 1024
        $region52: #{cluster_head_forward_stacked.1} parent=43 // pred_fallthru
          _
        %p315 = scmp.lt.s32.totalorder %s26, 1
        %s316 = scalar_select %p315, %s26, 1
        %s317 = smul.addr %s316, 4
        %s318 = smul.addr %s317, 4
        %s319 = scalar_lea.vmem %s0, %s318
        %p320 = pneg %p47
        %p321 = pneg %p44
        %s322 = sand.u32 %s60, 1
        %s323 = scalar_lea.sflag [#allocation3], %s322
        %s324 = sand.u32 %s60, 1
        %s325 = smul.addr %s324, 128
        %s326 = scalar_lea.vmem [#allocation2], %s325
        %p327 = pneg %p73
        %p328 = pneg %p70
        %p329 = scmp.lt.s32.totalorder %s26, 1
        %s330 = scalar_select %p329, %s26, 1
        %s331 = scalar_lea.vmem %s2, %s330
        %p332 = pneg %p99
        %p333 = pneg %p96
        %p334 = scmp.lt.s32.totalorder %s26, 1
        %s335 = scalar_select %p334, %s26, 1
        %s336 = scalar_lea.vmem %s3, %s335
        %p337 = pneg %p125
        %p338 = pneg %p122
        %s339 = sand.u32 %s138, 1
        %s340 = scalar_lea.sflag [#allocation6], %s339
        %s341 = sand.u32 %s138, 1
        %s342 = smul.addr %s341, 64
        %s343 = scalar_lea.vmem [#allocation5], %s342
        %p344 = pneg %p151
        %p345 = pneg %p148
        %p346 = scmp.lt.s32.totalorder %s26, 1
        %s347 = scalar_select %p346, %s26, 1
        %s348 = scalar_lea.vmem %s5, %s347
        %p349 = pneg %p177
        %p350 = pneg %p174
        %p351 = pneg %p203
        %p352 = pneg %p200
        %s353 = sand.u32 %s190, 1
        %s354 = scalar_lea.sflag [#allocation4], %s353
        %s355 = sand.u32 %s190, 1
        %s356 = smul.addr %s355, 16
        %s357 = scalar_lea.vmem [#allocation7], %s356
        %p358 = scmp.lt.s32.totalorder %s26, 1
        %s359 = scalar_select %p358, %s26, 1
        %s360 = smul.addr %s359, 4
        %s361 = smul.addr %s360, 4
        %s362 = scalar_lea.vmem %s0, %s361
        %p363 = scmp.lt.s32.totalorder %s26, 1
        %s364 = scalar_select %p363, %s26, 1
        %s365 = scalar_lea.vmem %s2, %s364
        %p366 = scmp.lt.s32.totalorder %s26, 1
        %s367 = scalar_select %p366, %s26, 1
        %s368 = scalar_lea.vmem %s3, %s367
        %p369 = scmp.lt.s32.totalorder %s26, 1
        %s370 = scalar_select %p369, %s26, 1
        %s371 = scalar_lea.vmem %s5, %s370
        %v373 = vld [vmem:[%s362] sm:$0xff]
        %v374 = vld [vmem:[%s362 + $0x8] sm:$0xff]
        %v375 = vld [vmem:[%s301] sm:$0xf]
        %v376 = vld [vmem:[%s301 + $0x4] sm:$0xf]
        %v377 = vld [vmem:[%s301 + $0x8] sm:$0xf]
        %v378 = vld [vmem:[%s301 + $0xc] sm:$0xf]
        %v379 = vld [vmem:[%s301 + $0x10] sm:$0xf]
        %v380 = vld [vmem:[%s301 + $0x14] sm:$0xf]
        %v381 = vld [vmem:[%s301 + $0x18] sm:$0xf]
        %v382 = vld [vmem:[%s301 + $0x1c] sm:$0xf]
        %v383 = vld [vmem:[%s301 + $0x20] sm:$0xf]
        %v384 = vld [vmem:[%s301 + $0x24] sm:$0xf]
        %v385 = vld [vmem:[%s301 + $0x28] sm:$0xf]
        %v386 = vld [vmem:[%s301 + $0x2c] sm:$0xf]
        %v387 = vld [vmem:[%s301 + $0x30] sm:$0xf]
        %v388 = vld [vmem:[%s301 + $0x34] sm:$0xf]
        %v389 = vld [vmem:[%s301 + $0x38] sm:$0xf]
        %v390 = vld [vmem:[%s301 + $0x3c] sm:$0xf]
        %v391 = vld [vmem:[%s301 + $0x40] sm:$0xf]
        %v392 = vld [vmem:[%s301 + $0x44] sm:$0xf]
        %v393 = vld [vmem:[%s301 + $0x48] sm:$0xf]
        %v394 = vld [vmem:[%s301 + $0x4c] sm:$0xf]
        %v395 = vld [vmem:[%s301 + $0x50] sm:$0xf]
        %v396 = vld [vmem:[%s301 + $0x54] sm:$0xf]
        %v397 = vld [vmem:[%s301 + $0x58] sm:$0xf]
        %v398 = vld [vmem:[%s301 + $0x5c] sm:$0xf]
        %v399 = vld [vmem:[%s301 + $0x60] sm:$0xf]
        %v400 = vld [vmem:[%s301 + $0x64] sm:$0xf]
        %v401 = vld [vmem:[%s301 + $0x68] sm:$0xf]
        %v402 = vld [vmem:[%s301 + $0x6c] sm:$0xf]
        %v403 = vld [vmem:[%s301 + $0x70] sm:$0xf]
        %v404 = vld [vmem:[%s301 + $0x74] sm:$0xf]
        %v405 = vld [vmem:[%s301 + $0x78] sm:$0xf]
        %v406 = vld [vmem:[%s301 + $0x7c] sm:$0xf]
        %v409 = vunpack.c.l.b16 %v373
        %v410 = vunpack.c.h.b16 %v373
        %v411 = vunpack.c.l.b16 %v374
        %v412 = vunpack.c.h.b16 %v374
        %v413 = vpack.c.b16 %v411, %v409
        %v414 = vpack.c.b16 %v412, %v410
        %v449 = vunpack.c.l.b16 %v375
        %v450 = vunpack.c.l.b16 %v376
        %v451 = vunpack.c.l.b16 %v377
        %v452 = vunpack.c.l.b16 %v378
        %v453 = vunpack.c.l.b16 %v379
        %v454 = vunpack.c.l.b16 %v380
        %v455 = vunpack.c.l.b16 %v381
        %v456 = vunpack.c.l.b16 %v382
        %v457 = vunpack.c.l.b16 %v383
        %v458 = vunpack.c.l.b16 %v384
        %v459 = vunpack.c.l.b16 %v385
        %v460 = vunpack.c.l.b16 %v386
        %v461 = vunpack.c.l.b16 %v387
        %v462 = vunpack.c.l.b16 %v388
        %v463 = vunpack.c.l.b16 %v389
        %v464 = vunpack.c.l.b16 %v390
        %v465 = vunpack.c.l.b16 %v391
        %v466 = vunpack.c.l.b16 %v392
        %v467 = vunpack.c.l.b16 %v393
        %v468 = vunpack.c.l.b16 %v394
        %v469 = vunpack.c.l.b16 %v395
        %v470 = vunpack.c.l.b16 %v396
        %v471 = vunpack.c.l.b16 %v397
        %v472 = vunpack.c.l.b16 %v398
        %v473 = vunpack.c.l.b16 %v399
        %v474 = vunpack.c.l.b16 %v400
        %v475 = vunpack.c.l.b16 %v401
        %v476 = vunpack.c.l.b16 %v402
        %v477 = vunpack.c.l.b16 %v403
        %v478 = vunpack.c.l.b16 %v404
        %v479 = vunpack.c.l.b16 %v405
        %v480 = vunpack.c.l.b16 %v406
        %v481 = vpack.c.b16 %v450, %v449
        %v482 = vpack.c.b16 %v452, %v451
        %v483 = vpack.c.b16 %v454, %v453
        %v484 = vpack.c.b16 %v456, %v455
        %v485 = vpack.c.b16 %v458, %v457
        %v486 = vpack.c.b16 %v460, %v459
        %v487 = vpack.c.b16 %v462, %v461
        %v488 = vpack.c.b16 %v464, %v463
        %v489 = vpack.c.b16 %v466, %v465
        %v490 = vpack.c.b16 %v468, %v467
        %v491 = vpack.c.b16 %v470, %v469
        %v492 = vpack.c.b16 %v472, %v471
        %v493 = vpack.c.b16 %v474, %v473
        %v494 = vpack.c.b16 %v476, %v475
        %v495 = vpack.c.b16 %v478, %v477
        %v496 = vpack.c.b16 %v480, %v479
        %513 = vmatprep.subr.bf16.mxu0 0
        %514 = vmatpush1.bf16.msra.mxu0 %v481
        %515 = vmatprep.subr.bf16.mxu0 0
        %516 = vmatpush1.bf16.msra.mxu0 %v482
        %517 = vmatprep.subr.bf16.mxu0 0
        %518 = vmatpush1.bf16.msra.mxu0 %v483
        %519 = vmatprep.subr.bf16.mxu0 0
        %520 = vmatpush1.bf16.msra.mxu0 %v484
        %521 = vmatprep.subr.bf16.mxu0 0
        %522 = vmatpush1.bf16.msra.mxu0 %v485
        %523 = vmatprep.subr.bf16.mxu0 0
        %524 = vmatpush1.bf16.msra.mxu0 %v486
        %525 = vmatprep.subr.bf16.mxu0 0
        %526 = vmatpush1.bf16.msra.mxu0 %v487
        %527 = vmatprep.subr.bf16.mxu0 0
        %528 = vmatpush1.bf16.msra.mxu0 %v488
        %529 = vmatprep.subr.bf16.mxu0 0
        %530 = vmatpush1.bf16.msra.mxu0 %v489
        %531 = vmatprep.subr.bf16.mxu0 0
        %532 = vmatpush1.bf16.msra.mxu0 %v490
        %533 = vmatprep.subr.bf16.mxu0 0
        %534 = vmatpush1.bf16.msra.mxu0 %v491
        %535 = vmatprep.subr.bf16.mxu0 0
        %536 = vmatpush1.bf16.msra.mxu0 %v492
        %537 = vmatprep.subr.bf16.mxu0 0
        %538 = vmatpush1.bf16.msra.mxu0 %v493
        %539 = vmatprep.subr.bf16.mxu0 0
        %540 = vmatpush1.bf16.msra.mxu0 %v494
        %541 = vmatprep.subr.bf16.mxu0 0
        %542 = vmatpush1.bf16.msra.mxu0 %v495
        %543 = vmatprep.subr.bf16.mxu0 0
        %544 = vmatpush1.bf16.msra.mxu0 %v496
        %545 = vmatprep.mubr.bf16.mxu0 %v414
        %546 = vmatmul.mubr.bf16.gmra.mrb[0].mxu0 %v413
        %v547 = vpop.f32.mrb[0].mxu0
        %v548 = vadd.f32 0.0, %v547
        %v549 = vpop.f32.mrb[0].mxu0
        %v550 = vpop.f32.mrb[0].mxu0
        %v551 = vadd.f32 0.0, %v550
        %v552 = vpop.f32.mrb[0].mxu0
        %553 = vdwg.mxu0
        %v554 = vadd.f32 %v548, %v551
        %v555 = vrot.slane %v554, 4
        %v556 = vadd.f32 %v554, %v555
        %v557 = vrot.slane %v556, 2
        %v558 = vadd.f32 %v556, %v557
        %v559 = vrot.slane %v558, 1
        %v560 = vadd.f32 %v558, %v559
        %v561 = vmul.f32 %v560, 0.0625
        %v562 = vsub.f32 %v548, %v561
        %v563 = vsub.f32 %v551, %v561
        %v564 = vmul.f32 %v562, %v562
        %v565 = vmul.f32 %v563, %v563
        %v566 = vadd.f32 %v564, %v565
        %v567 = vrot.slane %v566, 4
        %v568 = vadd.f32 %v566, %v567
        %v569 = vrot.slane %v568, 2
        %v570 = vadd.f32 %v568, %v569
        %v571 = vrot.slane %v570, 1
        %v572 = vadd.f32 %v570, %v571
        %v573 = vmul.f32 %v572, 0.0625
        %v574 = vld [vmem:[%s365] sm:$0x1]
        %v575 = vadd.f32 %v573, 1e-05
        %v576 = vrsqrt.pop %v575
        %v577 = vmul.f32 %v574, %v576
        %v578 = vld [vmem:[%s368] sm:$0x1]
        %v579 = vmul.f32 %v561, %v577
        %v580 = vsub.f32 %v578, %v579
        %v582 = vlaneseq
        %v583 = vshrl.u32 %v582, 7
        %v584 = vsub.s32 0, %v583
        %v585 = vrot.slane %v577, %v584
        %v587 = vmul.f32 %v548, %v585
        %v588 = vmul.f32 %v551, %v585
        %v590 = vlaneseq
        %v591 = vshrl.u32 %v590, 7
        %v592 = vsub.s32 0, %v591
        %v593 = vrot.slane %v580, %v592
        %v595 = vadd.f32 %v587, %v593
        %v596 = vadd.f32 %v588, %v593
        %v597 = vmax.f32 %v595, 0.0
        %v598 = vmax.f32 %v596, 0.0
        %v599 = vpack.c.bf16 %v598, %v597
        %v600 = vld [vmem:[%s310] sm:$0xf]
        %v601 = vld [vmem:[%s310 + $0x4] sm:$0xf]
        %v602 = vld [vmem:[%s310 + $0x8] sm:$0xf]
        %v603 = vld [vmem:[%s310 + $0xc] sm:$0xf]
        %v604 = vld [vmem:[%s310 + $0x10] sm:$0xf]
        %v605 = vld [vmem:[%s310 + $0x14] sm:$0xf]
        %v606 = vld [vmem:[%s310 + $0x18] sm:$0xf]
        %v607 = vld [vmem:[%s310 + $0x1c] sm:$0xf]
        %v608 = vld [vmem:[%s310 + $0x20] sm:$0xf]
        %v609 = vld [vmem:[%s310 + $0x24] sm:$0xf]
        %v610 = vld [vmem:[%s310 + $0x28] sm:$0xf]
        %v611 = vld [vmem:[%s310 + $0x2c] sm:$0xf]
        %v612 = vld [vmem:[%s310 + $0x30] sm:$0xf]
        %v613 = vld [vmem:[%s310 + $0x34] sm:$0xf]
        %v614 = vld [vmem:[%s310 + $0x38] sm:$0xf]
        %v615 = vld [vmem:[%s310 + $0x3c] sm:$0xf]
        %v616 = vld [vmem:[%s371] sm:$0x1]
        %v618 = vlaneseq
        %v619 = vshrl.u32 %v618, 7
        %v620 = vsub.s32 0, %v619
        %v621 = vrot.slane %v616, %v620
        %v639 = vunpack.c.l.b16 %v600
        %v640 = vunpack.c.l.b16 %v601
        %v641 = vunpack.c.l.b16 %v602
        %v642 = vunpack.c.l.b16 %v603
        %v643 = vunpack.c.l.b16 %v604
        %v644 = vunpack.c.l.b16 %v605
        %v645 = vunpack.c.l.b16 %v606
        %v646 = vunpack.c.l.b16 %v607
        %v647 = vunpack.c.l.b16 %v608
        %v648 = vunpack.c.l.b16 %v609
        %v649 = vunpack.c.l.b16 %v610
        %v650 = vunpack.c.l.b16 %v611
        %v651 = vunpack.c.l.b16 %v612
        %v652 = vunpack.c.l.b16 %v613
        %v653 = vunpack.c.l.b16 %v614
        %v654 = vunpack.c.l.b16 %v615
        %v655 = vpack.c.b16 %v640, %v639
        %v656 = vpack.c.b16 %v642, %v641
        %v657 = vpack.c.b16 %v644, %v643
        %v658 = vpack.c.b16 %v646, %v645
        %v659 = vpack.c.b16 %v648, %v647
        %v660 = vpack.c.b16 %v650, %v649
        %v661 = vpack.c.b16 %v652, %v651
        %v662 = vpack.c.b16 %v654, %v653
        %671 = vmatprep.subr.bf16.mxu0 0
        %672 = vmatpush1.bf16.msra.mxu0 %v655
        %673 = vmatprep.subr.bf16.mxu0 0
        %674 = vmatpush1.bf16.msra.mxu0 %v656
        %675 = vmatprep.subr.bf16.mxu0 0
        %676 = vmatpush1.bf16.msra.mxu0 %v657
        %677 = vmatprep.subr.bf16.mxu0 0
        %678 = vmatpush1.bf16.msra.mxu0 %v658
        %679 = vmatprep.subr.bf16.mxu0 0
        %680 = vmatpush1.bf16.msra.mxu0 %v659
        %681 = vmatprep.subr.bf16.mxu0 0
        %682 = vmatpush1.bf16.msra.mxu0 %v660
        %683 = vmatprep.subr.bf16.mxu0 0
        %684 = vmatpush1.bf16.msra.mxu0 %v661
        %685 = vmatprep.subr.bf16.mxu0 0
        %686 = vmatpush1.bf16.msra.mxu0 %v662
        %687 = vmatprep.subr.bf16.mxu0 0
        %688 = vmatpush1.bf16.msra.mxu0 0
        %689 = vmatprep.subr.bf16.mxu0 0
        %690 = vmatpush1.bf16.msra.mxu0 0
        %691 = vmatprep.subr.bf16.mxu0 0
        %692 = vmatpush1.bf16.msra.mxu0 0
        %693 = vmatprep.subr.bf16.mxu0 0
        %694 = vmatpush1.bf16.msra.mxu0 0
        %695 = vmatprep.subr.bf16.mxu0 0
        %696 = vmatpush1.bf16.msra.mxu0 0
        %697 = vmatprep.subr.bf16.mxu0 0
        %698 = vmatpush1.bf16.msra.mxu0 0
        %699 = vmatprep.subr.bf16.mxu0 0
        %700 = vmatpush1.bf16.msra.mxu0 0
        %701 = vmatprep.subr.bf16.mxu0 0
        %702 = vmatpush1.bf16.msra.mxu0 0
        %703 = vmatprep.mubr.bf16.mxu0 0
        %704 = vmatmul.mubr.bf16.gmra.mrb[0].mxu0 %v599
        %v705 = vpop.f32.mrb[0].mxu0
        %v706 = vadd.f32 %v621, %v705
        %v707 = vpop.f32.mrb[0].mxu0
        %v708 = vpop.f32.mrb[0].mxu0
        %v709 = vadd.f32 %v621, %v708
        %v710 = vpop.f32.mrb[0].mxu0
        %711 = vdwg.mxu0
        %712 = vmax.xlane.f32.xlu0 %v706
        %v713 = vpop.xlane.xlu0 %712
        %714 = vmax.xlane.f32.xlu0 %v709
        %v715 = vpop.xlane.xlu0 %714
        %v716 = vsub.f32 %v706, %v713
        %v717 = vsub.f32 %v709, %v715
        %v718 = vmul.f32 %v716, 1.442695
        %v719 = vpow.pop %v718
        %v720 = vmul.f32 %v717, 1.442695
        %v721 = vpow.pop %v720
        %722 = vadd.xlane.f32.xlu0 %v719
        %v723 = vpop.xlane.xlu0 %722
        %724 = vadd.xlane.f32.xlu0 %v721
        %v725 = vpop.xlane.xlu0 %724
        %v726 = vrcp.pop %v723
        %v727 = vmul.f32 %v719, %v726
        %v728 = vrcp.pop %v725
        %v729 = vmul.f32 %v721, %v728
        %730 = vst [vmem:[%s357] sm:$0xff] %v727
        %731 = vst [vmem:[%s357 + $0x8] sm:$0xff] %v729
        %s732 = sand.u32 %s190, 1
        %s733 = scalar_lea.sflag [#allocation4], %s732
        %s734 = sand.u32 %s190, 1
        %s735 = smul.addr %s734, 16
        %s736 = scalar_lea.vmem [#allocation7], %s735
        // Predicated region
        $region53: #{cluster_head_forward_stacked.1} parent=43 // pred_check
          %p737 = pneg %p200
        $region54: #{cluster_head_forward_stacked.1} parent=43 // pred_check_branch
          %739 = sbr.rel (%p737) target = $region56
        $region55: #{cluster_head_forward_stacked.1} parent=43 // pred_region
          %s741 = ssub.s32 256, 256
          %742 = vsyncadd %s733, %s741
          %s743 = smul.addr %s26, 2
          %s744 = smul.addr %s743, 128
          %s745 = scalar_lea.hbm %s6, %s744
          %s746 = sshll.u32 %s736, 4
          %s747 = int_to_ptr.vmem [resolvable:$true] %s746
          %752 = dma.vmem_to_hbm [thread:$0]  %s747, 256, %s745, %s733, 128, 128, 8
        $region56: #{cluster_head_forward_stacked.1} parent=43 // pred_fallthru
          _
      $region44: #{cluster_head_forward_stacked.1} parent=5 // pred_fallthru
        _
      %p753 = scmp.le.s32.totalorder 2, %s21
      // Predicated region
      $region57: #{cluster_head_forward_stacked.1} parent=5 // pred_check
        %p754 = pneg %p753
      $region58: #{cluster_head_forward_stacked.1} parent=5 // pred_check_branch
        %756 = sbr.rel (%p754) target = $region60
      $region59: #{cluster_head_forward_stacked.1} parent=5 // pred_region
        %s757 = ssub.s32 %s21, 2
        // Predicated region
        $region61: #{cluster_head_forward_stacked.1} parent=59 // pred_check
          %p758 = pneg %p206
        $region62: #{cluster_head_forward_stacked.1} parent=59 // pred_check_branch
          %760 = sbr.rel (%p758) target = $region64
        $region63: #{cluster_head_forward_stacked.1} parent=59 // pred_region
          %s761 = sand.u32 %s191, 1
          %s762 = scalar_lea.sflag [#allocation4], %s761
          %s763 = sand.u32 %s191, 1
          %s764 = smul.addr %s763, 16
          %s765 = scalar_lea.vmem [#allocation7], %s764
          %766 = dma.done %s762, 256
        $region64: #{cluster_head_forward_stacked.1} parent=59 // pred_fallthru
          _
      $region60: #{cluster_head_forward_stacked.1} parent=5 // pred_fallthru
        _
    $region6: #{cluster_head_forward_stacked.1} parent=1 // loop_footer
      %s25 = sadd.s32 1, %s21
    $region7: #{cluster_head_forward_stacked.1} parent=1 // loop_footer_branch
      %20 = sbr.rel target = $region3
    $region8: #{cluster_head_forward_stacked.1} parent=1 // loop_exit
      _
    %767 = vsyncpa [#allocation3], 1
    %s768 = scalar_lea.sflag [#allocation3], 1
    %769 = vsyncpa %s768, 1
    %770 = vsyncpa [#allocation6], 1
    %s771 = scalar_lea.sflag [#allocation6], 1
    %772 = vsyncpa %s771, 1
    %773 = vsyncpa [#allocation4], 1
    %s774 = scalar_lea.sflag [#allocation4], 1
    %775 = vsyncpa %s774, 1

</llo_original>
